<compile_context>
chip_gen: v7x
topology: tpu7x:2x2x1
jax: 0.10.0
libtpu: 0.0.40
codegen_flags: <defaults>
</compile_context>

<pallas_src>
import jax
import jax.numpy as jnp
from jax.experimental import pallas as pl
from jax.experimental.pallas import tpu as pltpu


def _round_up(x, m):
    return (x + m - 1) // m * m


def _policy_mlp_kernel(x_ref, w1_ref, b1_ref, w2_ref, b2_ref, w3_ref, b3_ref,
                       o_ref):
    """One batch tile, transposed orientation.

    x_ref:  [s,  tb]   states^T (batch along lanes)
    w*_ref: W^T (bf16 or f32), b*_ref: column biases (f32)
    o_ref:  [a,  tb]   tanh output^T (only the real action rows)
    """
    cd = w1_ref.dtype          # MXU-input dtype; accumulation is always f32.
    a = o_ref.shape[0]         # real action_dim (static)

    # fc1: [hp, s] @ [s, tb] -> [hp, tb]
    h1 = jnp.dot(w1_ref[...], x_ref[...].astype(cd),
                 preferred_element_type=jnp.float32)
    h1 = jnp.maximum(h1 + b1_ref[...], 0.0)            # f32 VPU (lane-broadcast bias)

    # fc2: [hp, hp] @ [hp, tb] -> [hp, tb]
    h2 = jnp.dot(w2_ref[...], h1.astype(cd),
                 preferred_element_type=jnp.float32)
    h2 = jnp.maximum(h2 + b2_ref[...], 0.0)             # f32 VPU

    # fc3: [ap, hp] @ [hp, tb] -> [ap, tb]  (ap = action_dim padded to 8 sublanes)
    h3 = jnp.dot(w3_ref[...], h2.astype(cd),
                 preferred_element_type=jnp.float32)
    # Only the real action rows get tanh'd (EUP) and stored (lane-dense, 4 B/row).
    o_ref[...] = jnp.tanh(h3[:a, :] + b3_ref[...][:a, :]).astype(o_ref.dtype)


def init_params(key, state_dim, action_dim, hidden_dim):
    """PyTorch-nn.Linear-like uniform fan-in init; W is [in, out], b is [1, out]."""
    ks = jax.random.split(key, 6)

    def lin(kw, kb, fan_in, fan_out):
        bound = 1.0 / jnp.sqrt(jnp.float32(fan_in))
        w = jax.random.uniform(kw, (fan_in, fan_out), jnp.float32, -bound, bound)
        b = jax.random.uniform(kb, (1, fan_out), jnp.float32, -bound, bound)
        return w, b

    w1, b1 = lin(ks[0], ks[1], state_dim, hidden_dim)
    w2, b2 = lin(ks[2], ks[3], hidden_dim, hidden_dim)
    w3, b3 = lin(ks[4], ks[5], hidden_dim, action_dim)
    return (w1, b1, w2, b2, w3, b3)


def prepare_params(params, compute_dtype=jnp.bfloat16):
    """Transpose weights, zero-pad hidden/action dims, cast to the MXU dtype.

    bf16 is the default on every generation (v5e's MXU is bf16-native too).
    Zero padding preserves the forward exactly: padded hidden rows are
    relu(0)=0 and multiply zero weight columns; padded fc3 rows are sliced off
    in-kernel.  Call once, reuse per forward.
    """
    w1, b1, w2, b2, w3, b3 = params
    s, h = w1.shape
    a = w3.shape[1]
    hp = _round_up(h, 128)    # hidden (sublane dim of W^T / activations^T)
    ap = _round_up(a, 8)      # fc3 output rows, sublane granularity

    w1t = jnp.zeros((hp, s), compute_dtype).at[:h, :].set(w1.T.astype(compute_dtype))
    b1t = jnp.zeros((hp, 1), jnp.float32).at[:h, :].set(b1.T)
    w2t = jnp.zeros((hp, hp), compute_dtype).at[:h, :h].set(w2.T.astype(compute_dtype))
    b2t = jnp.zeros((hp, 1), jnp.float32).at[:h, :].set(b2.T)
    w3t = jnp.zeros((ap, hp), compute_dtype).at[:a, :h].set(w3.T.astype(compute_dtype))
    b3t = jnp.zeros((ap, 1), jnp.float32).at[:a, :].set(b3.T)
    return (w1t, b1t, w2t, b2t, w3t, b3t)


def policy_network_forward(state, prepared_params, action_dim, *, block_b=2048):
    """state: [B, state_dim] f32 -> actions [B, action_dim] f32 in (-1, 1)."""
    w1t, b1t, w2t, b2t, w3t, b3t = prepared_params
    B, s = state.shape
    hp = w1t.shape[0]
    ap = w3t.shape[0]

    # Batch tile along the lane dim.  Round the cap to a multiple of 256
    # (MXU row tile on v6e/v7x; also a multiple of v5e's 128 and of 8), so
    # any caller-supplied block_b lowers cleanly.  Small/medium batches run
    # as ONE grid step (block == full dim is always legal); only large
    # batches split, which is exactly when v7x megacore sharding pays off.
    block_b = max(256, _round_up(block_b, 256))
    tb = B if B <= block_b else block_b
    grid = (pl.cdiv(B, tb),)   # ragged last block (if any) is masked by Pallas

    x_t = state.T              # [s, B]; no feature/batch padding copy needed

    out_t = pl.pallas_call(
        _policy_mlp_kernel,
        out_shape=jax.ShapeDtypeStruct((action_dim, B), jnp.float32),
        grid_spec=pltpu.PrefetchScalarGridSpec(
            num_scalar_prefetch=0,
            grid=grid,
            in_specs=[
                pl.BlockSpec((s, tb), lambda i: (0, i)),    # x^T: streamed per tile
                pl.BlockSpec((hp, s), lambda i: (0, 0)),    # weights / biases:
                pl.BlockSpec((hp, 1), lambda i: (0, 0)),    #   constant index_map
                pl.BlockSpec((hp, hp), lambda i: (0, 0)),   #   -> DMA'd once,
                pl.BlockSpec((hp, 1), lambda i: (0, 0)),    #   VMEM-resident
                pl.BlockSpec((ap, hp), lambda i: (0, 0)),
                pl.BlockSpec((ap, 1), lambda i: (0, 0)),
            ],
            out_specs=pl.BlockSpec((action_dim, tb), lambda i: (0, i)),
        ),
        compiler_params=pltpu.CompilerParams(
            # Batch tiles are independent: megacore-shard on v7x when the grid
            # has >1 step (no-op for grid=1 and on v5e/v6e).
            dimension_semantics=("parallel",),
            # ~5 MiB worst-case working set at tb=2048; 32 MiB is safe on
            # every generation (v7x physical VMEM is 64 MiB).
            vmem_limit_bytes=32 * 1024 * 1024,
        ),
    )(x_t, w1t, b1t, w2t, b2t, w3t, b3t)

    return out_t.T


def _reference_forward(state, params):
    w1, b1, w2, b2, w3, b3 = params
    h = jnp.maximum(state @ w1 + b1, 0.0)
    h = jnp.maximum(h @ w2 + b2, 0.0)
    return jnp.tanh(h @ w3 + b3)


if __name__ == "__main__":
    # Pendulum-v1: observation dim = 3, action dim = 1; module default hidden = 256.
    state_dim, action_dim, hidden_dim = 3, 1, 256

    key = jax.random.PRNGKey(0)
    k_params, k1, k2, k3 = jax.random.split(key, 4)
    params = init_params(k_params, state_dim, action_dim, hidden_dim)

    # --- f32 compute path, tiny batch (single grid step): tight check. ---
    state_small = jax.random.normal(k1, (8, state_dim), jnp.float32)
    params_f32 = prepare_params(params, compute_dtype=jnp.float32)
    out_small = jax.block_until_ready(
        policy_network_forward(state_small, params_f32, action_dim))
    ref_small = _reference_forward(state_small, params)
    assert out_small.shape == (8, action_dim)
    assert jnp.allclose(out_small, ref_small, atol=1e-4, rtol=1e-4)

    # --- bf16 MXU path, ragged batch over a 2-step grid (Pallas-masked tail). ---
    state_mid = jax.random.normal(k2, (300, state_dim), jnp.float32)
    params_bf16 = prepare_params(params)  # bf16 default (incl. v5e)
    out_mid = jax.block_until_ready(
        policy_network_forward(state_mid, params_bf16, action_dim, block_b=256))
    ref_mid = _reference_forward(state_mid, params)
    assert out_mid.shape == (300, action_dim)
    assert jnp.allclose(out_mid, ref_mid, atol=5e-2, rtol=5e-2)

    # --- bf16 MXU path, default big tile (B=1024 -> single grid step). ---
    state_big = jax.random.normal(k3, (1024, state_dim), jnp.float32)
    out_big = jax.block_until_ready(
        policy_network_forward(state_big, params_bf16, action_dim))
    ref_big = _reference_forward(state_big, params)
    assert out_big.shape == (1024, action_dim)
    assert jnp.allclose(out_big, ref_big, atol=5e-2, rtol=5e-2)

    print("KERNEL_OK")
</pallas_src>

<mosaic_0001>
module attributes {stable_mosaic.version = 11 : i64} {
  func.func @_policy_mlp_kernel(%arg0: i32, %arg1: memref<3x8xf32, #tpu.memory_space<vmem>>, %arg2: memref<256x3xf32, #tpu.memory_space<vmem>>, %arg3: memref<256x1xf32, #tpu.memory_space<vmem>>, %arg4: memref<256x256xf32, #tpu.memory_space<vmem>>, %arg5: memref<256x1xf32, #tpu.memory_space<vmem>>, %arg6: memref<8x256xf32, #tpu.memory_space<vmem>>, %arg7: memref<8x1xf32, #tpu.memory_space<vmem>>, %arg8: memref<1x8xf32, #tpu.memory_space<vmem>>) attributes {dimension_semantics = [#tpu.dimension_semantics<parallel>], iteration_bounds = array<i64: 1>, scalar_prefetch = 0 : i64, scratch_operands = 0 : i64, tpu.core_type = #tpu.core_type<tc>, window_params = [{transform_indices = @transform_0, window_bounds = array<i64: 3, 8>}, {pipeline_mode = #tpu.pipeline_mode<synchronous>, transform_indices = @transform_1, window_bounds = array<i64: 256, 3>}, {pipeline_mode = #tpu.pipeline_mode<synchronous>, transform_indices = @transform_2, window_bounds = array<i64: 256, 1>}, {pipeline_mode = #tpu.pipeline_mode<synchronous>, transform_indices = @transform_3, window_bounds = array<i64: 256, 256>}, {pipeline_mode = #tpu.pipeline_mode<synchronous>, transform_indices = @transform_4, window_bounds = array<i64: 256, 1>}, {pipeline_mode = #tpu.pipeline_mode<synchronous>, transform_indices = @transform_5, window_bounds = array<i64: 8, 256>}, {pipeline_mode = #tpu.pipeline_mode<synchronous>, transform_indices = @transform_6, window_bounds = array<i64: 8, 1>}, {transform_indices = @transform_7, window_bounds = array<i64: 1, 8>}]} {
    %c0 = arith.constant 0 : index
    %c0_0 = arith.constant 0 : index
    %0 = vector.load %arg2[%c0, %c0_0] : memref<256x3xf32, #tpu.memory_space<vmem>>, vector<256x3xf32>
    %c0_1 = arith.constant 0 : index
    %c0_2 = arith.constant 0 : index
    %1 = vector.load %arg1[%c0_1, %c0_2] : memref<3x8xf32, #tpu.memory_space<vmem>>, vector<3x8xf32>
    %cst = arith.constant dense<0.000000e+00> : vector<256x8xf32>
    %2 = tpu.matmul %0, %1, %cst {dimension_numbers = #tpu.dot_dimension_numbers<[1], [0], [0], [1], [0, 0, 1, 1], [], []>} : vector<256x3xf32>, vector<3x8xf32>, vector<256x8xf32> -> vector<256x8xf32>
    %c0_3 = arith.constant 0 : index
    %c0_4 = arith.constant 0 : index
    %3 = vector.load %arg3[%c0_3, %c0_4] : memref<256x1xf32, #tpu.memory_space<vmem>>, vector<256x1xf32>
    %4 = vector.broadcast %3 : vector<256x1xf32> to vector<256x8xf32>
    %5 = arith.addf %2, %4 : vector<256x8xf32>
    %cst_5 = arith.constant 0.000000e+00 : f32
    %6 = vector.broadcast %cst_5 : f32 to vector<256x8xf32>
    %7 = arith.maximumf %5, %6 : vector<256x8xf32>
    %c0_6 = arith.constant 0 : index
    %c0_7 = arith.constant 0 : index
    %8 = vector.load %arg4[%c0_6, %c0_7] : memref<256x256xf32, #tpu.memory_space<vmem>>, vector<256x256xf32>
    %cst_8 = arith.constant dense<0.000000e+00> : vector<256x8xf32>
    %9 = tpu.matmul %8, %7, %cst_8 {dimension_numbers = #tpu.dot_dimension_numbers<[1], [0], [0], [1], [0, 0, 1, 1], [], []>} : vector<256x256xf32>, vector<256x8xf32>, vector<256x8xf32> -> vector<256x8xf32>
    %c0_9 = arith.constant 0 : index
    %c0_10 = arith.constant 0 : index
    %10 = vector.load %arg5[%c0_9, %c0_10] : memref<256x1xf32, #tpu.memory_space<vmem>>, vector<256x1xf32>
    %11 = vector.broadcast %10 : vector<256x1xf32> to vector<256x8xf32>
    %12 = arith.addf %9, %11 : vector<256x8xf32>
    %cst_11 = arith.constant 0.000000e+00 : f32
    %13 = vector.broadcast %cst_11 : f32 to vector<256x8xf32>
    %14 = arith.maximumf %12, %13 : vector<256x8xf32>
    %c0_12 = arith.constant 0 : index
    %c0_13 = arith.constant 0 : index
    %15 = vector.load %arg6[%c0_12, %c0_13] : memref<8x256xf32, #tpu.memory_space<vmem>>, vector<8x256xf32>
    %cst_14 = arith.constant dense<0.000000e+00> : vector<8x8xf32>
    %16 = tpu.matmul %15, %14, %cst_14 {dimension_numbers = #tpu.dot_dimension_numbers<[1], [0], [0], [1], [0, 0, 1, 1], [], []>} : vector<8x256xf32>, vector<256x8xf32>, vector<8x8xf32> -> vector<8x8xf32>
    %17 = vector.extract_strided_slice %16 {offsets = [0, 0], sizes = [1, 8], strides = [1, 1]} : vector<8x8xf32> to vector<1x8xf32>
    %c0_15 = arith.constant 0 : index
    %c0_16 = arith.constant 0 : index
    %18 = vector.load %arg7[%c0_15, %c0_16] : memref<8x1xf32, #tpu.memory_space<vmem>>, vector<8x1xf32>
    %19 = vector.extract_strided_slice %18 {offsets = [0, 0], sizes = [1, 1], strides = [1, 1]} : vector<8x1xf32> to vector<1x1xf32>
    %20 = vector.broadcast %19 : vector<1x1xf32> to vector<1x8xf32>
    %21 = arith.addf %17, %20 : vector<1x8xf32>
    %22 = math.tanh %21 : vector<1x8xf32>
    %c0_17 = arith.constant 0 : index
    %c0_18 = arith.constant 0 : index
    %23 = vector.load %arg8[%c0_17, %c0_18] : memref<1x8xf32, #tpu.memory_space<vmem>>, vector<1x8xf32>
    tpu.vector_store %arg8[%c0_17, %c0_18], %22 {strides = array<i32>} : memref<1x8xf32, #tpu.memory_space<vmem>>, vector<1x8xf32>,
    return
  }
  func.func @transform_0(%arg0: i32) -> (i32, i32) {
    %c0_i32 = arith.constant 0 : i32
    %c0_i32_0 = arith.constant 0 : i32
    return %c0_i32, %arg0 : i32, i32
  }
  func.func @transform_1(%arg0: i32) -> (i32, i32) {
    %c0_i32 = arith.constant 0 : i32
    %c0_i32_0 = arith.constant 0 : i32
    %c0_i32_1 = arith.constant 0 : i32
    return %c0_i32, %c0_i32_0 : i32, i32
  }
  func.func @transform_2(%arg0: i32) -> (i32, i32) {
    %c0_i32 = arith.constant 0 : i32
    %c0_i32_0 = arith.constant 0 : i32
    %c0_i32_1 = arith.constant 0 : i32
    return %c0_i32, %c0_i32_0 : i32, i32
  }
  func.func @transform_3(%arg0: i32) -> (i32, i32) {
    %c0_i32 = arith.constant 0 : i32
    %c0_i32_0 = arith.constant 0 : i32
    %c0_i32_1 = arith.constant 0 : i32
    return %c0_i32, %c0_i32_0 : i32, i32
  }
  func.func @transform_4(%arg0: i32) -> (i32, i32) {
    %c0_i32 = arith.constant 0 : i32
    %c0_i32_0 = arith.constant 0 : i32
    %c0_i32_1 = arith.constant 0 : i32
    return %c0_i32, %c0_i32_0 : i32, i32
  }
  func.func @transform_5(%arg0: i32) -> (i32, i32) {
    %c0_i32 = arith.constant 0 : i32
    %c0_i32_0 = arith.constant 0 : i32
    %c0_i32_1 = arith.constant 0 : i32
    return %c0_i32, %c0_i32_0 : i32, i32
  }
  func.func @transform_6(%arg0: i32) -> (i32, i32) {
    %c0_i32 = arith.constant 0 : i32
    %c0_i32_0 = arith.constant 0 : i32
    %c0_i32_1 = arith.constant 0 : i32
    return %c0_i32, %c0_i32_0 : i32, i32
  }
  func.func @transform_7(%arg0: i32) -> (i32, i32) {
    %c0_i32 = arith.constant 0 : i32
    %c0_i32_0 = arith.constant 0 : i32
    return %c0_i32, %arg0 : i32, i32
  }
}

</mosaic_0001>

<llo_original>
// kernel: tpu_custom_call.1
$region0: #{tpu_custom_call.1}
  #allocation0 [shape = 'u32[]', space=smem, size = 0x4, offset = 0x4, fixed_abs, tag = 'smem constant byte address 0x4 - core index']
  #allocation1 [shape = 'u32[144,128]{1,0:T(1,128)}', space=vmem, size = 0x12000, scoped, tag = 'internal scratch']
  %s0 = inlined_call_operand.vmem [shape: f32[3,8], index: 0, kind: input, shape index: {}]
  %s1 = inlined_call_operand.vmem [shape: f32[256,3], index: 1, kind: input, shape index: {}]
  %s2 = inlined_call_operand.vmem [shape: f32[256,1], index: 2, kind: input, shape index: {}]
  %s3 = inlined_call_operand.vmem [shape: f32[256,256], index: 3, kind: input, shape index: {}]
  %s4 = inlined_call_operand.vmem [shape: f32[256,1], index: 4, kind: input, shape index: {}]
  %s5 = inlined_call_operand.vmem [shape: f32[8,256], index: 5, kind: input, shape index: {}]
  %s6 = inlined_call_operand.vmem [shape: f32[8,1], index: 6, kind: input, shape index: {}]
  %s7 = inlined_call_operand.hbm [shape: f32[1,8], index: 7, kind: output, shape index: {}]
  %s8 = sld [smem:[#allocation0]]
  $region38: #{tpu_custom_call.1} parent=0
    _
  %s10 = ssub.s32 1, %s8
  %s11 = scalar_select 0, %s10, %s8
  $region1: #{tpu_custom_call.1} parent=0
    #allocation2 [shape = 'u8[512]{0}', space=vmem, size = 0x400, scoped, tag = 'output window, operand 0, single buffered']
    #allocation3 [shape = 's32[1]{0}', space=sflag, size = 0x4, scoped, tag = 'scoped memory for tpu_custom_call.1']
    %12 = vsyncpa [#allocation3], 0
    // Predicated region
    $region2: #{tpu_custom_call.1} parent=1 // pred_check
      _
    $region3: #{tpu_custom_call.1} parent=1 // pred_check_branch
      %14 = sbr.rel (0) target = $region5
    $region4: #{tpu_custom_call.1} parent=1 // pred_region
      _
    $region5: #{tpu_custom_call.1} parent=1 // pred_fallthru
      _
    // Predicated region
    $region6: #{tpu_custom_call.1} parent=1 // pred_check
      _
    $region7: #{tpu_custom_call.1} parent=1 // pred_check_branch
      %16 = sbr.rel (0) target = $region9
    $region8: #{tpu_custom_call.1} parent=1 // pred_region
      _
    $region9: #{tpu_custom_call.1} parent=1 // pred_fallthru
      _
    // Predicated region
    $region10: #{tpu_custom_call.1} parent=1 // pred_check
      _
    $region11: #{tpu_custom_call.1} parent=1 // pred_check_branch
      %18 = sbr.rel (0) target = $region13
    $region12: #{tpu_custom_call.1} parent=1 // pred_region
      _
    $region13: #{tpu_custom_call.1} parent=1 // pred_fallthru
      _
    // Predicated region
    $region14: #{tpu_custom_call.1} parent=1 // pred_check
      _
    $region15: #{tpu_custom_call.1} parent=1 // pred_check_branch
      %20 = sbr.rel (0) target = $region17
    $region16: #{tpu_custom_call.1} parent=1 // pred_region
      _
    $region17: #{tpu_custom_call.1} parent=1 // pred_fallthru
      _
    // Predicated region
    $region18: #{tpu_custom_call.1} parent=1 // pred_check
      _
    $region19: #{tpu_custom_call.1} parent=1 // pred_check_branch
      %22 = sbr.rel (0) target = $region21
    $region20: #{tpu_custom_call.1} parent=1 // pred_region
      _
    $region21: #{tpu_custom_call.1} parent=1 // pred_fallthru
      _
    // Predicated region
    $region22: #{tpu_custom_call.1} parent=1 // pred_check
      _
    $region23: #{tpu_custom_call.1} parent=1 // pred_check_branch
      %24 = sbr.rel (0) target = $region25
    $region24: #{tpu_custom_call.1} parent=1 // pred_region
      _
    $region25: #{tpu_custom_call.1} parent=1 // pred_fallthru
      _
    // Predicated region
    $region26: #{tpu_custom_call.1} parent=1 // pred_check
      _
    $region27: #{tpu_custom_call.1} parent=1 // pred_check_branch
      %26 = sbr.rel (0) target = $region29
    $region28: #{tpu_custom_call.1} parent=1 // pred_region
      _
    $region29: #{tpu_custom_call.1} parent=1 // pred_fallthru
      _
    %v27 = vld [vmem:[%s1] sm:$0xff]
    %v28 = vld [vmem:[%s1 + $0x8] sm:$0xff]
    %v29 = vld [vmem:[%s1 + $0x10] sm:$0xff]
    %v30 = vld [vmem:[%s1 + $0x18] sm:$0xff]
    %v31 = vld [vmem:[%s1 + $0x20] sm:$0xff]
    %v32 = vld [vmem:[%s1 + $0x28] sm:$0xff]
    %v33 = vld [vmem:[%s1 + $0x30] sm:$0xff]
    %v34 = vld [vmem:[%s1 + $0x38] sm:$0xff]
    %v35 = vld [vmem:[%s1 + $0x40] sm:$0xff]
    %v36 = vld [vmem:[%s1 + $0x48] sm:$0xff]
    %v37 = vld [vmem:[%s1 + $0x50] sm:$0xff]
    %v38 = vld [vmem:[%s1 + $0x58] sm:$0xff]
    %v39 = vld [vmem:[%s1 + $0x60] sm:$0xff]
    %v40 = vld [vmem:[%s1 + $0x68] sm:$0xff]
    %v41 = vld [vmem:[%s1 + $0x70] sm:$0xff]
    %v42 = vld [vmem:[%s1 + $0x78] sm:$0xff]
    %v43 = vld [vmem:[%s1 + $0x80] sm:$0xff]
    %v44 = vld [vmem:[%s1 + $0x88] sm:$0xff]
    %v45 = vld [vmem:[%s1 + $0x90] sm:$0xff]
    %v46 = vld [vmem:[%s1 + $0x98] sm:$0xff]
    %v47 = vld [vmem:[%s1 + $0xa0] sm:$0xff]
    %v48 = vld [vmem:[%s1 + $0xa8] sm:$0xff]
    %v49 = vld [vmem:[%s1 + $0xb0] sm:$0xff]
    %v50 = vld [vmem:[%s1 + $0xb8] sm:$0xff]
    %v51 = vld [vmem:[%s1 + $0xc0] sm:$0xff]
    %v52 = vld [vmem:[%s1 + $0xc8] sm:$0xff]
    %v53 = vld [vmem:[%s1 + $0xd0] sm:$0xff]
    %v54 = vld [vmem:[%s1 + $0xd8] sm:$0xff]
    %v55 = vld [vmem:[%s1 + $0xe0] sm:$0xff]
    %v56 = vld [vmem:[%s1 + $0xe8] sm:$0xff]
    %v57 = vld [vmem:[%s1 + $0xf0] sm:$0xff]
    %v58 = vld [vmem:[%s1 + $0xf8] sm:$0xff]
    %v59 = vld [vmem:[%s0] sm:$0x7]
    %v60 = vld [vmem:[%s2] sm:$0xff]
    %v61 = vld [vmem:[%s2 + $0x8] sm:$0xff]
    %v62 = vld [vmem:[%s2 + $0x10] sm:$0xff]
    %v63 = vld [vmem:[%s2 + $0x18] sm:$0xff]
    %v64 = vld [vmem:[%s2 + $0x20] sm:$0xff]
    %v65 = vld [vmem:[%s2 + $0x28] sm:$0xff]
    %v66 = vld [vmem:[%s2 + $0x30] sm:$0xff]
    %v67 = vld [vmem:[%s2 + $0x38] sm:$0xff]
    %v68 = vld [vmem:[%s2 + $0x40] sm:$0xff]
    %v69 = vld [vmem:[%s2 + $0x48] sm:$0xff]
    %v70 = vld [vmem:[%s2 + $0x50] sm:$0xff]
    %v71 = vld [vmem:[%s2 + $0x58] sm:$0xff]
    %v72 = vld [vmem:[%s2 + $0x60] sm:$0xff]
    %v73 = vld [vmem:[%s2 + $0x68] sm:$0xff]
    %v74 = vld [vmem:[%s2 + $0x70] sm:$0xff]
    %v75 = vld [vmem:[%s2 + $0x78] sm:$0xff]
    %v76 = vld [vmem:[%s2 + $0x80] sm:$0xff]
    %v77 = vld [vmem:[%s2 + $0x88] sm:$0xff]
    %v78 = vld [vmem:[%s2 + $0x90] sm:$0xff]
    %v79 = vld [vmem:[%s2 + $0x98] sm:$0xff]
    %v80 = vld [vmem:[%s2 + $0xa0] sm:$0xff]
    %v81 = vld [vmem:[%s2 + $0xa8] sm:$0xff]
    %v82 = vld [vmem:[%s2 + $0xb0] sm:$0xff]
    %v83 = vld [vmem:[%s2 + $0xb8] sm:$0xff]
    %v84 = vld [vmem:[%s2 + $0xc0] sm:$0xff]
    %v85 = vld [vmem:[%s2 + $0xc8] sm:$0xff]
    %v86 = vld [vmem:[%s2 + $0xd0] sm:$0xff]
    %v87 = vld [vmem:[%s2 + $0xd8] sm:$0xff]
    %v88 = vld [vmem:[%s2 + $0xe0] sm:$0xff]
    %v89 = vld [vmem:[%s2 + $0xe8] sm:$0xff]
    %v90 = vld [vmem:[%s2 + $0xf0] sm:$0xff]
    %v91 = vld [vmem:[%s2 + $0xf8] sm:$0xff]
    %93 = vset.pattern.permute.xlu0 0
    %94 = vperm.xlu0 %93, %v60
    %v95 = vpop.permute.xlu0 %94
    %98 = vset.pattern.permute.xlu0 0
    %99 = vperm.xlu0 %98, %v61
    %v100 = vpop.permute.xlu0 %99
    %103 = vset.pattern.permute.xlu0 0
    %104 = vperm.xlu0 %103, %v62
    %v105 = vpop.permute.xlu0 %104
    %108 = vset.pattern.permute.xlu0 0
    %109 = vperm.xlu0 %108, %v63
    %v110 = vpop.permute.xlu0 %109
    %113 = vset.pattern.permute.xlu0 0
    %114 = vperm.xlu0 %113, %v64
    %v115 = vpop.permute.xlu0 %114
    %118 = vset.pattern.permute.xlu0 0
    %119 = vperm.xlu0 %118, %v65
    %v120 = vpop.permute.xlu0 %119
    %123 = vset.pattern.permute.xlu0 0
    %124 = vperm.xlu0 %123, %v66
    %v125 = vpop.permute.xlu0 %124
    %128 = vset.pattern.permute.xlu0 0
    %129 = vperm.xlu0 %128, %v67
    %v130 = vpop.permute.xlu0 %129
    %133 = vset.pattern.permute.xlu0 0
    %134 = vperm.xlu0 %133, %v68
    %v135 = vpop.permute.xlu0 %134
    %138 = vset.pattern.permute.xlu0 0
    %139 = vperm.xlu0 %138, %v69
    %v140 = vpop.permute.xlu0 %139
    %143 = vset.pattern.permute.xlu0 0
    %144 = vperm.xlu0 %143, %v70
    %v145 = vpop.permute.xlu0 %144
    %148 = vset.pattern.permute.xlu0 0
    %149 = vperm.xlu0 %148, %v71
    %v150 = vpop.permute.xlu0 %149
    %153 = vset.pattern.permute.xlu0 0
    %154 = vperm.xlu0 %153, %v72
    %v155 = vpop.permute.xlu0 %154
    %158 = vset.pattern.permute.xlu0 0
    %159 = vperm.xlu0 %158, %v73
    %v160 = vpop.permute.xlu0 %159
    %163 = vset.pattern.permute.xlu0 0
    %164 = vperm.xlu0 %163, %v74
    %v165 = vpop.permute.xlu0 %164
    %168 = vset.pattern.permute.xlu0 0
    %169 = vperm.xlu0 %168, %v75
    %v170 = vpop.permute.xlu0 %169
    %173 = vset.pattern.permute.xlu0 0
    %174 = vperm.xlu0 %173, %v76
    %v175 = vpop.permute.xlu0 %174
    %178 = vset.pattern.permute.xlu0 0
    %179 = vperm.xlu0 %178, %v77
    %v180 = vpop.permute.xlu0 %179
    %183 = vset.pattern.permute.xlu0 0
    %184 = vperm.xlu0 %183, %v78
    %v185 = vpop.permute.xlu0 %184
    %188 = vset.pattern.permute.xlu0 0
    %189 = vperm.xlu0 %188, %v79
    %v190 = vpop.permute.xlu0 %189
    %193 = vset.pattern.permute.xlu0 0
    %194 = vperm.xlu0 %193, %v80
    %v195 = vpop.permute.xlu0 %194
    %198 = vset.pattern.permute.xlu0 0
    %199 = vperm.xlu0 %198, %v81
    %v200 = vpop.permute.xlu0 %199
    %203 = vset.pattern.permute.xlu0 0
    %204 = vperm.xlu0 %203, %v82
    %v205 = vpop.permute.xlu0 %204
    %208 = vset.pattern.permute.xlu0 0
    %209 = vperm.xlu0 %208, %v83
    %v210 = vpop.permute.xlu0 %209
    %213 = vset.pattern.permute.xlu0 0
    %214 = vperm.xlu0 %213, %v84
    %v215 = vpop.permute.xlu0 %214
    %218 = vset.pattern.permute.xlu0 0
    %219 = vperm.xlu0 %218, %v85
    %v220 = vpop.permute.xlu0 %219
    %223 = vset.pattern.permute.xlu0 0
    %224 = vperm.xlu0 %223, %v86
    %v225 = vpop.permute.xlu0 %224
    %228 = vset.pattern.permute.xlu0 0
    %229 = vperm.xlu0 %228, %v87
    %v230 = vpop.permute.xlu0 %229
    %233 = vset.pattern.permute.xlu0 0
    %234 = vperm.xlu0 %233, %v88
    %v235 = vpop.permute.xlu0 %234
    %238 = vset.pattern.permute.xlu0 0
    %239 = vperm.xlu0 %238, %v89
    %v240 = vpop.permute.xlu0 %239
    %243 = vset.pattern.permute.xlu0 0
    %244 = vperm.xlu0 %243, %v90
    %v245 = vpop.permute.xlu0 %244
    %248 = vset.pattern.permute.xlu0 0
    %249 = vperm.xlu0 %248, %v91
    %v250 = vpop.permute.xlu0 %249
    %vm252 = vcmask 23552
    %v254 = vsel %vm252, %v27, 0
    %v257 = vsel %vm252, %v28, 0
    %v260 = vsel %vm252, %v29, 0
    %v263 = vsel %vm252, %v30, 0
    %v266 = vsel %vm252, %v31, 0
    %v269 = vsel %vm252, %v32, 0
    %v272 = vsel %vm252, %v33, 0
    %v275 = vsel %vm252, %v34, 0
    %v278 = vsel %vm252, %v35, 0
    %v281 = vsel %vm252, %v36, 0
    %v284 = vsel %vm252, %v37, 0
    %v287 = vsel %vm252, %v38, 0
    %v290 = vsel %vm252, %v39, 0
    %v293 = vsel %vm252, %v40, 0
    %v296 = vsel %vm252, %v41, 0
    %v299 = vsel %vm252, %v42, 0
    %v302 = vsel %vm252, %v43, 0
    %v305 = vsel %vm252, %v44, 0
    %v308 = vsel %vm252, %v45, 0
    %v311 = vsel %vm252, %v46, 0
    %v314 = vsel %vm252, %v47, 0
    %v317 = vsel %vm252, %v48, 0
    %v320 = vsel %vm252, %v49, 0
    %v323 = vsel %vm252, %v50, 0
    %v326 = vsel %vm252, %v51, 0
    %v329 = vsel %vm252, %v52, 0
    %v332 = vsel %vm252, %v53, 0
    %v335 = vsel %vm252, %v54, 0
    %v338 = vsel %vm252, %v55, 0
    %v341 = vsel %vm252, %v56, 0
    %v344 = vsel %vm252, %v57, 0
    %v347 = vsel %vm252, %v58, 0
    %vm349 = vcmask 1042432
    %v351 = vsel %vm349, %v59, 0
    %353 = vmatprep.subr.mxu0 0.0
    %354 = vmatpush1.msra.mxu0 %v351
    %355 = vmatprep.subr.mxu0 0.0
    %356 = vmatpush1.msra.mxu0 0.0
    %357 = vmatprep.subr.mxu0 0.0
    %358 = vmatpush1.msra.mxu0 0.0
    %359 = vmatprep.subr.mxu0 0.0
    %360 = vmatpush1.msra.mxu0 0.0
    %361 = vmatprep.subr.mxu0 0.0
    %362 = vmatpush1.msra.mxu0 0.0
    %363 = vmatprep.subr.mxu0 0.0
    %364 = vmatpush1.msra.mxu0 0.0
    %365 = vmatprep.subr.mxu0 0.0
    %366 = vmatpush1.msra.mxu0 0.0
    %367 = vmatprep.subr.mxu0 0.0
    %368 = vmatpush1.msra.mxu0 0.0
    %369 = vmatprep.subr.mxu0 0.0
    %370 = vmatpush1.msra.mxu0 0.0
    %371 = vmatprep.subr.mxu0 0.0
    %372 = vmatpush1.msra.mxu0 0.0
    %373 = vmatprep.subr.mxu0 0.0
    %374 = vmatpush1.msra.mxu0 0.0
    %375 = vmatprep.subr.mxu0 0.0
    %376 = vmatpush1.msra.mxu0 0.0
    %377 = vmatprep.subr.mxu0 0.0
    %378 = vmatpush1.msra.mxu0 0.0
    %379 = vmatprep.subr.mxu0 0.0
    %380 = vmatpush1.msra.mxu0 0.0
    %381 = vmatprep.subr.mxu0 0.0
    %382 = vmatpush1.msra.mxu0 0.0
    %383 = vmatprep.subr.mxu0 0.0
    %384 = vmatpush1.msra.mxu0 0.0
    %385 = vmatprep.subr.mxu0 0.0
    %386 = vmatpush1.msra.mxu0 0.0
    %387 = vmatprep.subr.mxu0 0.0
    %388 = vmatpush1.msra.mxu0 0.0
    %389 = vmatprep.subr.mxu0 0.0
    %390 = vmatpush1.msra.mxu0 0.0
    %391 = vmatprep.subr.mxu0 0.0
    %392 = vmatpush1.msra.mxu0 0.0
    %393 = vmatprep.subr.mxu0 0.0
    %394 = vmatpush1.msra.mxu0 0.0
    %395 = vmatprep.subr.mxu0 0.0
    %396 = vmatpush1.msra.mxu0 0.0
    %397 = vmatprep.subr.mxu0 0.0
    %398 = vmatpush1.msra.mxu0 0.0
    %399 = vmatprep.subr.mxu0 0.0
    %400 = vmatpush1.msra.mxu0 0.0
    %401 = vmatprep.subr.mxu0 0.0
    %402 = vmatpush1.msra.mxu0 0.0
    %403 = vmatprep.subr.mxu0 0.0
    %404 = vmatpush1.msra.mxu0 0.0
    %405 = vmatprep.subr.mxu0 0.0
    %406 = vmatpush1.msra.mxu0 0.0
    %407 = vmatprep.subr.mxu0 0.0
    %408 = vmatpush1.msra.mxu0 0.0
    %409 = vmatprep.subr.mxu0 0.0
    %410 = vmatpush1.msra.mxu0 0.0
    %411 = vmatprep.subr.mxu0 0.0
    %412 = vmatpush1.msra.mxu0 0.0
    %413 = vmatprep.subr.mxu0 0.0
    %414 = vmatpush1.msra.mxu0 0.0
    %415 = vmatprep.subr.mxu0 0.0
    %416 = vmatpush1.msra.mxu0 0.0
    %417 = vmatprep.mubr.f32.mxu0 0.0
    %418 = vmatmul.mubr.f32.gmra.mrb[0].mxu0 %v254
    %v419 = vpop.f32.mrb[0].mxu0
    %v420 = vadd.f32 %v95, %v419
    %v421 = vpop.f32.mrb[0].mxu0
    %422 = vmatprep.mubr.f32.mxu0 0.0
    %423 = vmatmul.mubr.f32.gmra.mrb[0].mxu0 %v257
    %v424 = vpop.f32.mrb[0].mxu0
    %v425 = vadd.f32 %v100, %v424
    %v426 = vpop.f32.mrb[0].mxu0
    %427 = vmatprep.mubr.f32.mxu0 0.0
    %428 = vmatmul.mubr.f32.gmra.mrb[0].mxu0 %v260
    %v429 = vpop.f32.mrb[0].mxu0
    %v430 = vadd.f32 %v105, %v429
    %v431 = vpop.f32.mrb[0].mxu0
    %432 = vmatprep.mubr.f32.mxu0 0.0
    %433 = vmatmul.mubr.f32.gmra.mrb[0].mxu0 %v263
    %v434 = vpop.f32.mrb[0].mxu0
    %v435 = vadd.f32 %v110, %v434
    %v436 = vpop.f32.mrb[0].mxu0
    %437 = vmatprep.mubr.f32.mxu0 0.0
    %438 = vmatmul.mubr.f32.gmra.mrb[0].mxu0 %v266
    %v439 = vpop.f32.mrb[0].mxu0
    %v440 = vadd.f32 %v115, %v439
    %v441 = vpop.f32.mrb[0].mxu0
    %442 = vmatprep.mubr.f32.mxu0 0.0
    %443 = vmatmul.mubr.f32.gmra.mrb[0].mxu0 %v269
    %v444 = vpop.f32.mrb[0].mxu0
    %v445 = vadd.f32 %v120, %v444
    %v446 = vpop.f32.mrb[0].mxu0
    %447 = vmatprep.mubr.f32.mxu0 0.0
    %448 = vmatmul.mubr.f32.gmra.mrb[0].mxu0 %v272
    %v449 = vpop.f32.mrb[0].mxu0
    %v450 = vadd.f32 %v125, %v449
    %v451 = vpop.f32.mrb[0].mxu0
    %452 = vmatprep.mubr.f32.mxu0 0.0
    %453 = vmatmul.mubr.f32.gmra.mrb[0].mxu0 %v275
    %v454 = vpop.f32.mrb[0].mxu0
    %v455 = vadd.f32 %v130, %v454
    %v456 = vpop.f32.mrb[0].mxu0
    %457 = vmatprep.mubr.f32.mxu0 0.0
    %458 = vmatmul.mubr.f32.gmra.mrb[0].mxu0 %v278
    %v459 = vpop.f32.mrb[0].mxu0
    %v460 = vadd.f32 %v135, %v459
    %v461 = vpop.f32.mrb[0].mxu0
    %462 = vmatprep.mubr.f32.mxu0 0.0
    %463 = vmatmul.mubr.f32.gmra.mrb[0].mxu0 %v281
    %v464 = vpop.f32.mrb[0].mxu0
    %v465 = vadd.f32 %v140, %v464
    %v466 = vpop.f32.mrb[0].mxu0
    %467 = vmatprep.mubr.f32.mxu0 0.0
    %468 = vmatmul.mubr.f32.gmra.mrb[0].mxu0 %v284
    %v469 = vpop.f32.mrb[0].mxu0
    %v470 = vadd.f32 %v145, %v469
    %v471 = vpop.f32.mrb[0].mxu0
    %472 = vmatprep.mubr.f32.mxu0 0.0
    %473 = vmatmul.mubr.f32.gmra.mrb[0].mxu0 %v287
    %v474 = vpop.f32.mrb[0].mxu0
    %v475 = vadd.f32 %v150, %v474
    %v476 = vpop.f32.mrb[0].mxu0
    %477 = vmatprep.mubr.f32.mxu0 0.0
    %478 = vmatmul.mubr.f32.gmra.mrb[0].mxu0 %v290
    %v479 = vpop.f32.mrb[0].mxu0
    %v480 = vadd.f32 %v155, %v479
    %v481 = vpop.f32.mrb[0].mxu0
    %482 = vmatprep.mubr.f32.mxu0 0.0
    %483 = vmatmul.mubr.f32.gmra.mrb[0].mxu0 %v293
    %v484 = vpop.f32.mrb[0].mxu0
    %v485 = vadd.f32 %v160, %v484
    %v486 = vpop.f32.mrb[0].mxu0
    %487 = vmatprep.mubr.f32.mxu0 0.0
    %488 = vmatmul.mubr.f32.gmra.mrb[0].mxu0 %v296
    %v489 = vpop.f32.mrb[0].mxu0
    %v490 = vadd.f32 %v165, %v489
    %v491 = vpop.f32.mrb[0].mxu0
    %492 = vmatprep.mubr.f32.mxu0 0.0
    %493 = vmatmul.mubr.f32.gmra.mrb[0].mxu0 %v299
    %v494 = vpop.f32.mrb[0].mxu0
    %v495 = vadd.f32 %v170, %v494
    %v496 = vpop.f32.mrb[0].mxu0
    %497 = vmatprep.mubr.f32.mxu0 0.0
    %498 = vmatmul.mubr.f32.gmra.mrb[0].mxu0 %v302
    %v499 = vpop.f32.mrb[0].mxu0
    %v500 = vadd.f32 %v175, %v499
    %v501 = vpop.f32.mrb[0].mxu0
    %502 = vmatprep.mubr.f32.mxu0 0.0
    %503 = vmatmul.mubr.f32.gmra.mrb[0].mxu0 %v305
    %v504 = vpop.f32.mrb[0].mxu0
    %v505 = vadd.f32 %v180, %v504
    %v506 = vpop.f32.mrb[0].mxu0
    %507 = vmatprep.mubr.f32.mxu0 0.0
    %508 = vmatmul.mubr.f32.gmra.mrb[0].mxu0 %v308
    %v509 = vpop.f32.mrb[0].mxu0
    %v510 = vadd.f32 %v185, %v509
    %v511 = vpop.f32.mrb[0].mxu0
    %512 = vmatprep.mubr.f32.mxu0 0.0
    %513 = vmatmul.mubr.f32.gmra.mrb[0].mxu0 %v311
    %v514 = vpop.f32.mrb[0].mxu0
    %v515 = vadd.f32 %v190, %v514
    %v516 = vpop.f32.mrb[0].mxu0
    %517 = vmatprep.mubr.f32.mxu0 0.0
    %518 = vmatmul.mubr.f32.gmra.mrb[0].mxu0 %v314
    %v519 = vpop.f32.mrb[0].mxu0
    %v520 = vadd.f32 %v195, %v519
    %v521 = vpop.f32.mrb[0].mxu0
    %522 = vmatprep.mubr.f32.mxu0 0.0
    %523 = vmatmul.mubr.f32.gmra.mrb[0].mxu0 %v317
    %v524 = vpop.f32.mrb[0].mxu0
    %v525 = vadd.f32 %v200, %v524
    %v526 = vpop.f32.mrb[0].mxu0
    %527 = vmatprep.mubr.f32.mxu0 0.0
    %528 = vmatmul.mubr.f32.gmra.mrb[0].mxu0 %v320
    %v529 = vpop.f32.mrb[0].mxu0
    %v530 = vadd.f32 %v205, %v529
    %v531 = vpop.f32.mrb[0].mxu0
    %532 = vmatprep.mubr.f32.mxu0 0.0
    %533 = vmatmul.mubr.f32.gmra.mrb[0].mxu0 %v323
    %v534 = vpop.f32.mrb[0].mxu0
    %v535 = vadd.f32 %v210, %v534
    %v536 = vpop.f32.mrb[0].mxu0
    %537 = vmatprep.mubr.f32.mxu0 0.0
    %538 = vmatmul.mubr.f32.gmra.mrb[0].mxu0 %v326
    %v539 = vpop.f32.mrb[0].mxu0
    %v540 = vadd.f32 %v215, %v539
    %v541 = vpop.f32.mrb[0].mxu0
    %542 = vmatprep.mubr.f32.mxu0 0.0
    %543 = vmatmul.mubr.f32.gmra.mrb[0].mxu0 %v329
    %v544 = vpop.f32.mrb[0].mxu0
    %v545 = vadd.f32 %v220, %v544
    %v546 = vpop.f32.mrb[0].mxu0
    %547 = vmatprep.mubr.f32.mxu0 0.0
    %548 = vmatmul.mubr.f32.gmra.mrb[0].mxu0 %v332
    %v549 = vpop.f32.mrb[0].mxu0
    %v550 = vadd.f32 %v225, %v549
    %v551 = vpop.f32.mrb[0].mxu0
    %552 = vmatprep.mubr.f32.mxu0 0.0
    %553 = vmatmul.mubr.f32.gmra.mrb[0].mxu0 %v335
    %v554 = vpop.f32.mrb[0].mxu0
    %v555 = vadd.f32 %v230, %v554
    %v556 = vpop.f32.mrb[0].mxu0
    %557 = vmatprep.mubr.f32.mxu0 0.0
    %558 = vmatmul.mubr.f32.gmra.mrb[0].mxu0 %v338
    %v559 = vpop.f32.mrb[0].mxu0
    %v560 = vadd.f32 %v235, %v559
    %v561 = vpop.f32.mrb[0].mxu0
    %562 = vmatprep.mubr.f32.mxu0 0.0
    %563 = vmatmul.mubr.f32.gmra.mrb[0].mxu0 %v341
    %v564 = vpop.f32.mrb[0].mxu0
    %v565 = vadd.f32 %v240, %v564
    %v566 = vpop.f32.mrb[0].mxu0
    %567 = vmatprep.mubr.f32.mxu0 0.0
    %568 = vmatmul.mubr.f32.gmra.mrb[0].mxu0 %v344
    %v569 = vpop.f32.mrb[0].mxu0
    %v570 = vadd.f32 %v245, %v569
    %v571 = vpop.f32.mrb[0].mxu0
    %572 = vmatprep.mubr.f32.mxu0 0.0
    %573 = vmatmul.mubr.f32.gmra.mrb[0].mxu0 %v347
    %v574 = vpop.f32.mrb[0].mxu0
    %v575 = vadd.f32 %v250, %v574
    %v576 = vpop.f32.mrb[0].mxu0
    %577 = vdwg.mxu0
    %v578 = vmax.f32 %v420, 0.0
    %v579 = vmax.f32 %v425, 0.0
    %v580 = vmax.f32 %v430, 0.0
    %v581 = vmax.f32 %v435, 0.0
    %v582 = vmax.f32 %v440, 0.0
    %v583 = vmax.f32 %v445, 0.0
    %v584 = vmax.f32 %v450, 0.0
    %v585 = vmax.f32 %v455, 0.0
    %v586 = vmax.f32 %v460, 0.0
    %v587 = vmax.f32 %v465, 0.0
    %v588 = vmax.f32 %v470, 0.0
    %v589 = vmax.f32 %v475, 0.0
    %v590 = vmax.f32 %v480, 0.0
    %v591 = vmax.f32 %v485, 0.0
    %v592 = vmax.f32 %v490, 0.0
    %v593 = vmax.f32 %v495, 0.0
    %v594 = vmax.f32 %v500, 0.0
    %v595 = vmax.f32 %v505, 0.0
    %v596 = vmax.f32 %v510, 0.0
    %v597 = vmax.f32 %v515, 0.0
    %v598 = vmax.f32 %v520, 0.0
    %v599 = vmax.f32 %v525, 0.0
    %v600 = vmax.f32 %v530, 0.0
    %v601 = vmax.f32 %v535, 0.0
    %v602 = vmax.f32 %v540, 0.0
    %v603 = vmax.f32 %v545, 0.0
    %v604 = vmax.f32 %v550, 0.0
    %v605 = vmax.f32 %v555, 0.0
    %v606 = vmax.f32 %v560, 0.0
    %v607 = vmax.f32 %v565, 0.0
    %v608 = vmax.f32 %v570, 0.0
    %v609 = vmax.f32 %v575, 0.0
    %v610 = vld [vmem:[%s3] sm:$0xff]
    %v611 = vld [vmem:[%s3 + $0x8] sm:$0xff]
    %v612 = vld [vmem:[%s3 + $0x10] sm:$0xff]
    %v613 = vld [vmem:[%s3 + $0x18] sm:$0xff]
    %v614 = vld [vmem:[%s3 + $0x20] sm:$0xff]
    %v615 = vld [vmem:[%s3 + $0x28] sm:$0xff]
    %v616 = vld [vmem:[%s3 + $0x30] sm:$0xff]
    %v617 = vld [vmem:[%s3 + $0x38] sm:$0xff]
    %v618 = vld [vmem:[%s3 + $0x40] sm:$0xff]
    %v619 = vld [vmem:[%s3 + $0x48] sm:$0xff]
    %v620 = vld [vmem:[%s3 + $0x50] sm:$0xff]
    %v621 = vld [vmem:[%s3 + $0x58] sm:$0xff]
    %v622 = vld [vmem:[%s3 + $0x60] sm:$0xff]
    %v623 = vld [vmem:[%s3 + $0x68] sm:$0xff]
    %v624 = vld [vmem:[%s3 + $0x70] sm:$0xff]
    %v625 = vld [vmem:[%s3 + $0x78] sm:$0xff]
    %v626 = vld [vmem:[%s3 + $0x80] sm:$0xff]
    %v627 = vld [vmem:[%s3 + $0x88] sm:$0xff]
    %v628 = vld [vmem:[%s3 + $0x90] sm:$0xff]
    %v629 = vld [vmem:[%s3 + $0x98] sm:$0xff]
    %v630 = vld [vmem:[%s3 + $0xa0] sm:$0xff]
    %v631 = vld [vmem:[%s3 + $0xa8] sm:$0xff]
    %v632 = vld [vmem:[%s3 + $0xb0] sm:$0xff]
    %v633 = vld [vmem:[%s3 + $0xb8] sm:$0xff]
    %v634 = vld [vmem:[%s3 + $0xc0] sm:$0xff]
    %v635 = vld [vmem:[%s3 + $0xc8] sm:$0xff]
    %v636 = vld [vmem:[%s3 + $0xd0] sm:$0xff]
    %v637 = vld [vmem:[%s3 + $0xd8] sm:$0xff]
    %v638 = vld [vmem:[%s3 + $0xe0] sm:$0xff]
    %v639 = vld [vmem:[%s3 + $0xe8] sm:$0xff]
    %v640 = vld [vmem:[%s3 + $0xf0] sm:$0xff]
    %v641 = vld [vmem:[%s3 + $0xf8] sm:$0xff]
    %v642 = vld [vmem:[%s3 + $0x100] sm:$0xff]
    %v643 = vld [vmem:[%s3 + $0x108] sm:$0xff]
    %v644 = vld [vmem:[%s3 + $0x110] sm:$0xff]
    %v645 = vld [vmem:[%s3 + $0x118] sm:$0xff]
    %v646 = vld [vmem:[%s3 + $0x120] sm:$0xff]
    %v647 = vld [vmem:[%s3 + $0x128] sm:$0xff]
    %v648 = vld [vmem:[%s3 + $0x130] sm:$0xff]
    %v649 = vld [vmem:[%s3 + $0x138] sm:$0xff]
    %v650 = vld [vmem:[%s3 + $0x140] sm:$0xff]
    %v651 = vld [vmem:[%s3 + $0x148] sm:$0xff]
    %v652 = vld [vmem:[%s3 + $0x150] sm:$0xff]
    %v653 = vld [vmem:[%s3 + $0x158] sm:$0xff]
    %v654 = vld [vmem:[%s3 + $0x160] sm:$0xff]
    %v655 = vld [vmem:[%s3 + $0x168] sm:$0xff]
    %v656 = vld [vmem:[%s3 + $0x170] sm:$0xff]
    %v657 = vld [vmem:[%s3 + $0x178] sm:$0xff]
    %v658 = vld [vmem:[%s3 + $0x180] sm:$0xff]
    %v659 = vld [vmem:[%s3 + $0x188] sm:$0xff]
    %v660 = vld [vmem:[%s3 + $0x190] sm:$0xff]
    %v661 = vld [vmem:[%s3 + $0x198] sm:$0xff]
    %v662 = vld [vmem:[%s3 + $0x1a0] sm:$0xff]
    %v663 = vld [vmem:[%s3 + $0x1a8] sm:$0xff]
    %v664 = vld [vmem:[%s3 + $0x1b0] sm:$0xff]
    %v665 = vld [vmem:[%s3 + $0x1b8] sm:$0xff]
    %v666 = vld [vmem:[%s3 + $0x1c0] sm:$0xff]
    %v667 = vld [vmem:[%s3 + $0x1c8] sm:$0xff]
    %v668 = vld [vmem:[%s3 + $0x1d0] sm:$0xff]
    %v669 = vld [vmem:[%s3 + $0x1d8] sm:$0xff]
    %v670 = vld [vmem:[%s3 + $0x1e0] sm:$0xff]
    %v671 = vld [vmem:[%s3 + $0x1e8] sm:$0xff]
    %v672 = vld [vmem:[%s3 + $0x1f0] sm:$0xff]
    %v673 = vld [vmem:[%s3 + $0x1f8] sm:$0xff]
    %v674 = vld [vmem:[%s4] sm:$0xff]
    %v675 = vld [vmem:[%s4 + $0x8] sm:$0xff]
    %v676 = vld [vmem:[%s4 + $0x10] sm:$0xff]
    %v677 = vld [vmem:[%s4 + $0x18] sm:$0xff]
    %v678 = vld [vmem:[%s4 + $0x20] sm:$0xff]
    %v679 = vld [vmem:[%s4 + $0x28] sm:$0xff]
    %v680 = vld [vmem:[%s4 + $0x30] sm:$0xff]
    %v681 = vld [vmem:[%s4 + $0x38] sm:$0xff]
    %v682 = vld [vmem:[%s4 + $0x40] sm:$0xff]
    %v683 = vld [vmem:[%s4 + $0x48] sm:$0xff]
    %v684 = vld [vmem:[%s4 + $0x50] sm:$0xff]
    %v685 = vld [vmem:[%s4 + $0x58] sm:$0xff]
    %v686 = vld [vmem:[%s4 + $0x60] sm:$0xff]
    %v687 = vld [vmem:[%s4 + $0x68] sm:$0xff]
    %v688 = vld [vmem:[%s4 + $0x70] sm:$0xff]
    %v689 = vld [vmem:[%s4 + $0x78] sm:$0xff]
    %v690 = vld [vmem:[%s4 + $0x80] sm:$0xff]
    %v691 = vld [vmem:[%s4 + $0x88] sm:$0xff]
    %v692 = vld [vmem:[%s4 + $0x90] sm:$0xff]
    %v693 = vld [vmem:[%s4 + $0x98] sm:$0xff]
    %v694 = vld [vmem:[%s4 + $0xa0] sm:$0xff]
    %v695 = vld [vmem:[%s4 + $0xa8] sm:$0xff]
    %v696 = vld [vmem:[%s4 + $0xb0] sm:$0xff]
    %v697 = vld [vmem:[%s4 + $0xb8] sm:$0xff]
    %v698 = vld [vmem:[%s4 + $0xc0] sm:$0xff]
    %v699 = vld [vmem:[%s4 + $0xc8] sm:$0xff]
    %v700 = vld [vmem:[%s4 + $0xd0] sm:$0xff]
    %v701 = vld [vmem:[%s4 + $0xd8] sm:$0xff]
    %v702 = vld [vmem:[%s4 + $0xe0] sm:$0xff]
    %v703 = vld [vmem:[%s4 + $0xe8] sm:$0xff]
    %v704 = vld [vmem:[%s4 + $0xf0] sm:$0xff]
    %v705 = vld [vmem:[%s4 + $0xf8] sm:$0xff]
    %707 = vset.pattern.permute.xlu0 0
    %708 = vperm.xlu0 %707, %v674
    %v709 = vpop.permute.xlu0 %708
    %712 = vset.pattern.permute.xlu0 0
    %713 = vperm.xlu0 %712, %v675
    %v714 = vpop.permute.xlu0 %713
    %717 = vset.pattern.permute.xlu0 0
    %718 = vperm.xlu0 %717, %v676
    %v719 = vpop.permute.xlu0 %718
    %722 = vset.pattern.permute.xlu0 0
    %723 = vperm.xlu0 %722, %v677
    %v724 = vpop.permute.xlu0 %723
    %727 = vset.pattern.permute.xlu0 0
    %728 = vperm.xlu0 %727, %v678
    %v729 = vpop.permute.xlu0 %728
    %732 = vset.pattern.permute.xlu0 0
    %733 = vperm.xlu0 %732, %v679
    %v734 = vpop.permute.xlu0 %733
    %737 = vset.pattern.permute.xlu0 0
    %738 = vperm.xlu0 %737, %v680
    %v739 = vpop.permute.xlu0 %738
    %742 = vset.pattern.permute.xlu0 0
    %743 = vperm.xlu0 %742, %v681
    %v744 = vpop.permute.xlu0 %743
    %747 = vset.pattern.permute.xlu0 0
    %748 = vperm.xlu0 %747, %v682
    %v749 = vpop.permute.xlu0 %748
    %752 = vset.pattern.permute.xlu0 0
    %753 = vperm.xlu0 %752, %v683
    %v754 = vpop.permute.xlu0 %753
    %757 = vset.pattern.permute.xlu0 0
    %758 = vperm.xlu0 %757, %v684
    %v759 = vpop.permute.xlu0 %758
    %762 = vset.pattern.permute.xlu0 0
    %763 = vperm.xlu0 %762, %v685
    %v764 = vpop.permute.xlu0 %763
    %767 = vset.pattern.permute.xlu0 0
    %768 = vperm.xlu0 %767, %v686
    %v769 = vpop.permute.xlu0 %768
    %772 = vset.pattern.permute.xlu0 0
    %773 = vperm.xlu0 %772, %v687
    %v774 = vpop.permute.xlu0 %773
    %777 = vset.pattern.permute.xlu0 0
    %778 = vperm.xlu0 %777, %v688
    %v779 = vpop.permute.xlu0 %778
    %782 = vset.pattern.permute.xlu0 0
    %783 = vperm.xlu0 %782, %v689
    %v784 = vpop.permute.xlu0 %783
    %787 = vset.pattern.permute.xlu0 0
    %788 = vperm.xlu0 %787, %v690
    %v789 = vpop.permute.xlu0 %788
    %792 = vset.pattern.permute.xlu0 0
    %793 = vperm.xlu0 %792, %v691
    %v794 = vpop.permute.xlu0 %793
    %797 = vset.pattern.permute.xlu0 0
    %798 = vperm.xlu0 %797, %v692
    %v799 = vpop.permute.xlu0 %798
    %802 = vset.pattern.permute.xlu0 0
    %803 = vperm.xlu0 %802, %v693
    %v804 = vpop.permute.xlu0 %803
    %807 = vset.pattern.permute.xlu0 0
    %808 = vperm.xlu0 %807, %v694
    %v809 = vpop.permute.xlu0 %808
    %812 = vset.pattern.permute.xlu0 0
    %813 = vperm.xlu0 %812, %v695
    %v814 = vpop.permute.xlu0 %813
    %817 = vset.pattern.permute.xlu0 0
    %818 = vperm.xlu0 %817, %v696
    %v819 = vpop.permute.xlu0 %818
    %822 = vset.pattern.permute.xlu0 0
    %823 = vperm.xlu0 %822, %v697
    %v824 = vpop.permute.xlu0 %823
    %827 = vset.pattern.permute.xlu0 0
    %828 = vperm.xlu0 %827, %v698
    %v829 = vpop.permute.xlu0 %828
    %832 = vset.pattern.permute.xlu0 0
    %833 = vperm.xlu0 %832, %v699
    %v834 = vpop.permute.xlu0 %833
    %837 = vset.pattern.permute.xlu0 0
    %838 = vperm.xlu0 %837, %v700
    %v839 = vpop.permute.xlu0 %838
    %842 = vset.pattern.permute.xlu0 0
    %843 = vperm.xlu0 %842, %v701
    %v844 = vpop.permute.xlu0 %843
    %847 = vset.pattern.permute.xlu0 0
    %848 = vperm.xlu0 %847, %v702
    %v849 = vpop.permute.xlu0 %848
    %852 = vset.pattern.permute.xlu0 0
    %853 = vperm.xlu0 %852, %v703
    %v854 = vpop.permute.xlu0 %853
    %857 = vset.pattern.permute.xlu0 0
    %858 = vperm.xlu0 %857, %v704
    %v859 = vpop.permute.xlu0 %858
    %862 = vset.pattern.permute.xlu0 0
    %863 = vperm.xlu0 %862, %v705
    %v864 = vpop.permute.xlu0 %863
    %866 = vmatprep.subr.mxu0 0.0
    %867 = vmatpush1.msra.mxu0 %v578
    %868 = vmatprep.subr.mxu0 0.0
    %869 = vmatpush1.msra.mxu0 %v579
    %870 = vmatprep.subr.mxu0 0.0
    %871 = vmatpush1.msra.mxu0 %v580
    %872 = vmatprep.subr.mxu0 0.0
    %873 = vmatpush1.msra.mxu0 %v581
    %874 = vmatprep.subr.mxu0 0.0
    %875 = vmatpush1.msra.mxu0 %v582
    %876 = vmatprep.subr.mxu0 0.0
    %877 = vmatpush1.msra.mxu0 %v583
    %878 = vmatprep.subr.mxu0 0.0
    %879 = vmatpush1.msra.mxu0 %v584
    %880 = vmatprep.subr.mxu0 0.0
    %881 = vmatpush1.msra.mxu0 %v585
    %882 = vmatprep.subr.mxu0 0.0
    %883 = vmatpush1.msra.mxu0 %v586
    %884 = vmatprep.subr.mxu0 0.0
    %885 = vmatpush1.msra.mxu0 %v587
    %886 = vmatprep.subr.mxu0 0.0
    %887 = vmatpush1.msra.mxu0 %v588
    %888 = vmatprep.subr.mxu0 0.0
    %889 = vmatpush1.msra.mxu0 %v589
    %890 = vmatprep.subr.mxu0 0.0
    %891 = vmatpush1.msra.mxu0 %v590
    %892 = vmatprep.subr.mxu0 0.0
    %893 = vmatpush1.msra.mxu0 %v591
    %894 = vmatprep.subr.mxu0 0.0
    %895 = vmatpush1.msra.mxu0 %v592
    %896 = vmatprep.subr.mxu0 0.0
    %897 = vmatpush1.msra.mxu0 %v593
    %898 = vmatprep.subr.mxu0 0.0
    %899 = vmatpush1.msra.mxu0 %v594
    %900 = vmatprep.subr.mxu0 0.0
    %901 = vmatpush1.msra.mxu0 %v595
    %902 = vmatprep.subr.mxu0 0.0
    %903 = vmatpush1.msra.mxu0 %v596
    %904 = vmatprep.subr.mxu0 0.0
    %905 = vmatpush1.msra.mxu0 %v597
    %906 = vmatprep.subr.mxu0 0.0
    %907 = vmatpush1.msra.mxu0 %v598
    %908 = vmatprep.subr.mxu0 0.0
    %909 = vmatpush1.msra.mxu0 %v599
    %910 = vmatprep.subr.mxu0 0.0
    %911 = vmatpush1.msra.mxu0 %v600
    %912 = vmatprep.subr.mxu0 0.0
    %913 = vmatpush1.msra.mxu0 %v601
    %914 = vmatprep.subr.mxu0 0.0
    %915 = vmatpush1.msra.mxu0 %v602
    %916 = vmatprep.subr.mxu0 0.0
    %917 = vmatpush1.msra.mxu0 %v603
    %918 = vmatprep.subr.mxu0 0.0
    %919 = vmatpush1.msra.mxu0 %v604
    %920 = vmatprep.subr.mxu0 0.0
    %921 = vmatpush1.msra.mxu0 %v605
    %922 = vmatprep.subr.mxu0 0.0
    %923 = vmatpush1.msra.mxu0 %v606
    %924 = vmatprep.subr.mxu0 0.0
    %925 = vmatpush1.msra.mxu0 %v607
    %926 = vmatprep.subr.mxu0 0.0
    %927 = vmatpush1.msra.mxu0 %v608
    %928 = vmatprep.subr.mxu0 0.0
    %929 = vmatpush1.msra.mxu0 %v609
    %930 = vmatprep.mubr.f32.mxu0 %v611
    %931 = vmatmul.mubr.f32.gmra.mrb[0].mxu0 %v610
    %v932 = vpop.f32.mrb[0].mxu0
    %v933 = vadd.f32 %v709, %v932
    %v934 = vpop.f32.mrb[0].mxu0
    %935 = vmatprep.mubr.f32.mxu0 %v613
    %936 = vmatmul.mubr.f32.gmra.mrb[0].mxu0 %v612
    %v937 = vpop.f32.mrb[0].mxu0
    %v938 = vadd.f32 %v714, %v937
    %v939 = vpop.f32.mrb[0].mxu0
    %940 = vmatprep.mubr.f32.mxu0 %v615
    %941 = vmatmul.mubr.f32.gmra.mrb[0].mxu0 %v614
    %v942 = vpop.f32.mrb[0].mxu0
    %v943 = vadd.f32 %v719, %v942
    %v944 = vpop.f32.mrb[0].mxu0
    %945 = vmatprep.mubr.f32.mxu0 %v617
    %946 = vmatmul.mubr.f32.gmra.mrb[0].mxu0 %v616
    %v947 = vpop.f32.mrb[0].mxu0
    %v948 = vadd.f32 %v724, %v947
    %v949 = vpop.f32.mrb[0].mxu0
    %950 = vmatprep.mubr.f32.mxu0 %v619
    %951 = vmatmul.mubr.f32.gmra.mrb[0].mxu0 %v618
    %v952 = vpop.f32.mrb[0].mxu0
    %v953 = vadd.f32 %v729, %v952
    %v954 = vpop.f32.mrb[0].mxu0
    %955 = vmatprep.mubr.f32.mxu0 %v621
    %956 = vmatmul.mubr.f32.gmra.mrb[0].mxu0 %v620
    %v957 = vpop.f32.mrb[0].mxu0
    %v958 = vadd.f32 %v734, %v957
    %v959 = vpop.f32.mrb[0].mxu0
    %960 = vmatprep.mubr.f32.mxu0 %v623
    %961 = vmatmul.mubr.f32.gmra.mrb[0].mxu0 %v622
    %v962 = vpop.f32.mrb[0].mxu0
    %v963 = vadd.f32 %v739, %v962
    %v964 = vpop.f32.mrb[0].mxu0
    %965 = vmatprep.mubr.f32.mxu0 %v625
    %966 = vmatmul.mubr.f32.gmra.mrb[0].mxu0 %v624
    %v967 = vpop.f32.mrb[0].mxu0
    %v968 = vadd.f32 %v744, %v967
    %v969 = vpop.f32.mrb[0].mxu0
    %970 = vmatprep.mubr.f32.mxu0 %v627
    %971 = vmatmul.mubr.f32.gmra.mrb[0].mxu0 %v626
    %v972 = vpop.f32.mrb[0].mxu0
    %v973 = vadd.f32 %v749, %v972
    %v974 = vpop.f32.mrb[0].mxu0
    %975 = vmatprep.mubr.f32.mxu0 %v629
    %976 = vmatmul.mubr.f32.gmra.mrb[0].mxu0 %v628
    %v977 = vpop.f32.mrb[0].mxu0
    %v978 = vadd.f32 %v754, %v977
    %v979 = vpop.f32.mrb[0].mxu0
    %980 = vmatprep.mubr.f32.mxu0 %v631
    %981 = vmatmul.mubr.f32.gmra.mrb[0].mxu0 %v630
    %v982 = vpop.f32.mrb[0].mxu0
    %v983 = vadd.f32 %v759, %v982
    %v984 = vpop.f32.mrb[0].mxu0
    %985 = vmatprep.mubr.f32.mxu0 %v633
    %986 = vmatmul.mubr.f32.gmra.mrb[0].mxu0 %v632
    %v987 = vpop.f32.mrb[0].mxu0
    %v988 = vadd.f32 %v764, %v987
    %v989 = vpop.f32.mrb[0].mxu0
    %990 = vmatprep.mubr.f32.mxu0 %v635
    %991 = vmatmul.mubr.f32.gmra.mrb[0].mxu0 %v634
    %v992 = vpop.f32.mrb[0].mxu0
    %v993 = vadd.f32 %v769, %v992
    %v994 = vpop.f32.mrb[0].mxu0
    %995 = vmatprep.mubr.f32.mxu0 %v637
    %996 = vmatmul.mubr.f32.gmra.mrb[0].mxu0 %v636
    %v997 = vpop.f32.mrb[0].mxu0
    %v998 = vadd.f32 %v774, %v997
    %v999 = vpop.f32.mrb[0].mxu0
    %1000 = vmatprep.mubr.f32.mxu0 %v639
    %1001 = vmatmul.mubr.f32.gmra.mrb[0].mxu0 %v638
    %v1002 = vpop.f32.mrb[0].mxu0
    %v1003 = vadd.f32 %v779, %v1002
    %v1004 = vpop.f32.mrb[0].mxu0
    %1005 = vmatprep.mubr.f32.mxu0 %v641
    %1006 = vmatmul.mubr.f32.gmra.mrb[0].mxu0 %v640
    %v1007 = vpop.f32.mrb[0].mxu0
    %v1008 = vadd.f32 %v784, %v1007
    %v1009 = vpop.f32.mrb[0].mxu0
    %1010 = vmatprep.mubr.f32.mxu0 %v643
    %1011 = vmatmul.mubr.f32.gmra.mrb[0].mxu0 %v642
    %v1012 = vpop.f32.mrb[0].mxu0
    %v1013 = vadd.f32 %v789, %v1012
    %v1014 = vpop.f32.mrb[0].mxu0
    %1015 = vmatprep.mubr.f32.mxu0 %v645
    %1016 = vmatmul.mubr.f32.gmra.mrb[0].mxu0 %v644
    %v1017 = vpop.f32.mrb[0].mxu0
    %v1018 = vadd.f32 %v794, %v1017
    %v1019 = vpop.f32.mrb[0].mxu0
    %1020 = vmatprep.mubr.f32.mxu0 %v647
    %1021 = vmatmul.mubr.f32.gmra.mrb[0].mxu0 %v646
    %v1022 = vpop.f32.mrb[0].mxu0
    %v1023 = vadd.f32 %v799, %v1022
    %v1024 = vpop.f32.mrb[0].mxu0
    %1025 = vmatprep.mubr.f32.mxu0 %v649
    %1026 = vmatmul.mubr.f32.gmra.mrb[0].mxu0 %v648
    %v1027 = vpop.f32.mrb[0].mxu0
    %v1028 = vadd.f32 %v804, %v1027
    %v1029 = vpop.f32.mrb[0].mxu0
    %1030 = vmatprep.mubr.f32.mxu0 %v651
    %1031 = vmatmul.mubr.f32.gmra.mrb[0].mxu0 %v650
    %v1032 = vpop.f32.mrb[0].mxu0
    %v1033 = vadd.f32 %v809, %v1032
    %v1034 = vpop.f32.mrb[0].mxu0
    %1035 = vmatprep.mubr.f32.mxu0 %v653
    %1036 = vmatmul.mubr.f32.gmra.mrb[0].mxu0 %v652
    %v1037 = vpop.f32.mrb[0].mxu0
    %v1038 = vadd.f32 %v814, %v1037
    %v1039 = vpop.f32.mrb[0].mxu0
    %1040 = vmatprep.mubr.f32.mxu0 %v655
    %1041 = vmatmul.mubr.f32.gmra.mrb[0].mxu0 %v654
    %v1042 = vpop.f32.mrb[0].mxu0
    %v1043 = vadd.f32 %v819, %v1042
    %v1044 = vpop.f32.mrb[0].mxu0
    %1045 = vmatprep.mubr.f32.mxu0 %v657
    %1046 = vmatmul.mubr.f32.gmra.mrb[0].mxu0 %v656
    %v1047 = vpop.f32.mrb[0].mxu0
    %v1048 = vadd.f32 %v824, %v1047
    %v1049 = vpop.f32.mrb[0].mxu0
    %1050 = vmatprep.mubr.f32.mxu0 %v659
    %1051 = vmatmul.mubr.f32.gmra.mrb[0].mxu0 %v658
    %v1052 = vpop.f32.mrb[0].mxu0
    %v1053 = vadd.f32 %v829, %v1052
    %v1054 = vpop.f32.mrb[0].mxu0
    %1055 = vmatprep.mubr.f32.mxu0 %v661
    %1056 = vmatmul.mubr.f32.gmra.mrb[0].mxu0 %v660
    %v1057 = vpop.f32.mrb[0].mxu0
    %v1058 = vadd.f32 %v834, %v1057
    %v1059 = vpop.f32.mrb[0].mxu0
    %1060 = vmatprep.mubr.f32.mxu0 %v663
    %1061 = vmatmul.mubr.f32.gmra.mrb[0].mxu0 %v662
    %v1062 = vpop.f32.mrb[0].mxu0
    %v1063 = vadd.f32 %v839, %v1062
    %v1064 = vpop.f32.mrb[0].mxu0
    %1065 = vmatprep.mubr.f32.mxu0 %v665
    %1066 = vmatmul.mubr.f32.gmra.mrb[0].mxu0 %v664
    %v1067 = vpop.f32.mrb[0].mxu0
    %v1068 = vadd.f32 %v844, %v1067
    %v1069 = vpop.f32.mrb[0].mxu0
    %1070 = vmatprep.mubr.f32.mxu0 %v667
    %1071 = vmatmul.mubr.f32.gmra.mrb[0].mxu0 %v666
    %v1072 = vpop.f32.mrb[0].mxu0
    %v1073 = vadd.f32 %v849, %v1072
    %v1074 = vpop.f32.mrb[0].mxu0
    %1075 = vmatprep.mubr.f32.mxu0 %v669
    %1076 = vmatmul.mubr.f32.gmra.mrb[0].mxu0 %v668
    %v1077 = vpop.f32.mrb[0].mxu0
    %v1078 = vadd.f32 %v854, %v1077
    %v1079 = vpop.f32.mrb[0].mxu0
    %1080 = vmatprep.mubr.f32.mxu0 %v671
    %1081 = vmatmul.mubr.f32.gmra.mrb[0].mxu0 %v670
    %v1082 = vpop.f32.mrb[0].mxu0
    %v1083 = vadd.f32 %v859, %v1082
    %v1084 = vpop.f32.mrb[0].mxu0
    %1085 = vmatprep.mubr.f32.mxu0 %v673
    %1086 = vmatmul.mubr.f32.gmra.mrb[0].mxu0 %v672
    %v1087 = vpop.f32.mrb[0].mxu0
    %v1088 = vadd.f32 %v864, %v1087
    %v1089 = vpop.f32.mrb[0].mxu0
    %1090 = vdwg.mxu0
    %v1091 = vmax.f32 %v933, 0.0
    %v1092 = vmax.f32 %v938, 0.0
    %v1093 = vmax.f32 %v943, 0.0
    %v1094 = vmax.f32 %v948, 0.0
    %v1095 = vmax.f32 %v953, 0.0
    %v1096 = vmax.f32 %v958, 0.0
    %v1097 = vmax.f32 %v963, 0.0
    %v1098 = vmax.f32 %v968, 0.0
    %v1099 = vmax.f32 %v973, 0.0
    %v1100 = vmax.f32 %v978, 0.0
    %v1101 = vmax.f32 %v983, 0.0
    %v1102 = vmax.f32 %v988, 0.0
    %v1103 = vmax.f32 %v993, 0.0
    %v1104 = vmax.f32 %v998, 0.0
    %v1105 = vmax.f32 %v1003, 0.0
    %v1106 = vmax.f32 %v1008, 0.0
    %v1107 = vmax.f32 %v1013, 0.0
    %v1108 = vmax.f32 %v1018, 0.0
    %v1109 = vmax.f32 %v1023, 0.0
    %v1110 = vmax.f32 %v1028, 0.0
    %v1111 = vmax.f32 %v1033, 0.0
    %v1112 = vmax.f32 %v1038, 0.0
    %v1113 = vmax.f32 %v1043, 0.0
    %v1114 = vmax.f32 %v1048, 0.0
    %v1115 = vmax.f32 %v1053, 0.0
    %v1116 = vmax.f32 %v1058, 0.0
    %v1117 = vmax.f32 %v1063, 0.0
    %v1118 = vmax.f32 %v1068, 0.0
    %v1119 = vmax.f32 %v1073, 0.0
    %v1120 = vmax.f32 %v1078, 0.0
    %v1121 = vmax.f32 %v1083, 0.0
    %v1122 = vmax.f32 %v1088, 0.0
    %v1123 = vld [vmem:[%s5] sm:$0xff]
    %v1124 = vld [vmem:[%s5 + $0x8] sm:$0xff]
    %1125 = vmatprep.subr.mxu0 0.0
    %1126 = vmatpush1.msra.mxu0 %v1091
    %1127 = vmatprep.subr.mxu0 0.0
    %1128 = vmatpush1.msra.mxu0 %v1092
    %1129 = vmatprep.subr.mxu0 0.0
    %1130 = vmatpush1.msra.mxu0 %v1093
    %1131 = vmatprep.subr.mxu0 0.0
    %1132 = vmatpush1.msra.mxu0 %v1094
    %1133 = vmatprep.subr.mxu0 0.0
    %1134 = vmatpush1.msra.mxu0 %v1095
    %1135 = vmatprep.subr.mxu0 0.0
    %1136 = vmatpush1.msra.mxu0 %v1096
    %1137 = vmatprep.subr.mxu0 0.0
    %1138 = vmatpush1.msra.mxu0 %v1097
    %1139 = vmatprep.subr.mxu0 0.0
    %1140 = vmatpush1.msra.mxu0 %v1098
    %1141 = vmatprep.subr.mxu0 0.0
    %1142 = vmatpush1.msra.mxu0 %v1099
    %1143 = vmatprep.subr.mxu0 0.0
    %1144 = vmatpush1.msra.mxu0 %v1100
    %1145 = vmatprep.subr.mxu0 0.0
    %1146 = vmatpush1.msra.mxu0 %v1101
    %1147 = vmatprep.subr.mxu0 0.0
    %1148 = vmatpush1.msra.mxu0 %v1102
    %1149 = vmatprep.subr.mxu0 0.0
    %1150 = vmatpush1.msra.mxu0 %v1103
    %1151 = vmatprep.subr.mxu0 0.0
    %1152 = vmatpush1.msra.mxu0 %v1104
    %1153 = vmatprep.subr.mxu0 0.0
    %1154 = vmatpush1.msra.mxu0 %v1105
    %1155 = vmatprep.subr.mxu0 0.0
    %1156 = vmatpush1.msra.mxu0 %v1106
    %1157 = vmatprep.subr.mxu0 0.0
    %1158 = vmatpush1.msra.mxu0 %v1107
    %1159 = vmatprep.subr.mxu0 0.0
    %1160 = vmatpush1.msra.mxu0 %v1108
    %1161 = vmatprep.subr.mxu0 0.0
    %1162 = vmatpush1.msra.mxu0 %v1109
    %1163 = vmatprep.subr.mxu0 0.0
    %1164 = vmatpush1.msra.mxu0 %v1110
    %1165 = vmatprep.subr.mxu0 0.0
    %1166 = vmatpush1.msra.mxu0 %v1111
    %1167 = vmatprep.subr.mxu0 0.0
    %1168 = vmatpush1.msra.mxu0 %v1112
    %1169 = vmatprep.subr.mxu0 0.0
    %1170 = vmatpush1.msra.mxu0 %v1113
    %1171 = vmatprep.subr.mxu0 0.0
    %1172 = vmatpush1.msra.mxu0 %v1114
    %1173 = vmatprep.subr.mxu0 0.0
    %1174 = vmatpush1.msra.mxu0 %v1115
    %1175 = vmatprep.subr.mxu0 0.0
    %1176 = vmatpush1.msra.mxu0 %v1116
    %1177 = vmatprep.subr.mxu0 0.0
    %1178 = vmatpush1.msra.mxu0 %v1117
    %1179 = vmatprep.subr.mxu0 0.0
    %1180 = vmatpush1.msra.mxu0 %v1118
    %1181 = vmatprep.subr.mxu0 0.0
    %1182 = vmatpush1.msra.mxu0 %v1119
    %1183 = vmatprep.subr.mxu0 0.0
    %1184 = vmatpush1.msra.mxu0 %v1120
    %1185 = vmatprep.subr.mxu0 0.0
    %1186 = vmatpush1.msra.mxu0 %v1121
    %1187 = vmatprep.subr.mxu0 0.0
    %1188 = vmatpush1.msra.mxu0 %v1122
    %1189 = vmatprep.mubr.f32.mxu0 %v1124
    %1190 = vmatmul.mubr.f32.gmra.mrb[0].mxu0 %v1123
    %v1191 = vpop.f32.mrb[0].mxu0
    %v1192 = vadd.f32 0.0, %v1191
    %v1193 = vpop.f32.mrb[0].mxu0
    %1194 = vdwg.mxu0
    %v1195 = vld [vmem:[%s6] sm:$0xff]
    %1197 = vset.pattern.permute.xlu0 0
    %1198 = vperm.xlu0 %1197, %v1195
    %v1199 = vpop.permute.xlu0 %1198
    %v1201 = vadd.f32 %v1192, %v1199
    %v1202 = vtanh.pop %v1201
    %vm1203 = vcmask 57344
    %1204 = vst.msk [vmem:[#allocation2] sm:$0x1] %vm1203, %v1202
    // Predicated region
    $region30: #{tpu_custom_call.1} parent=1 // pred_check
      _
    $region31: #{tpu_custom_call.1} parent=1 // pred_check_branch
      %1206 = sbr.rel (0) target = $region33
    $region32: #{tpu_custom_call.1} parent=1 // pred_region
      %s1208 = ssub.s32 16, 16
      %1209 = vsyncadd [#allocation3], %s1208
      %s1211 = sshll.u32 [#allocation2], 4
      %s1212 = int_to_ptr.vmem [resolvable:$true] %s1211
      %1214 = dma.vmem_to_hbm [thread:$0]  %s1212, 16, %s7, [#allocation3]
    $region33: #{tpu_custom_call.1} parent=1 // pred_fallthru
      _
    // Predicated region
    $region34: #{tpu_custom_call.1} parent=1 // pred_check
      _
    $region35: #{tpu_custom_call.1} parent=1 // pred_check_branch
      %1216 = sbr.rel (0) target = $region37
    $region36: #{tpu_custom_call.1} parent=1 // pred_region
      %1217 = dma.done [#allocation3], 16
    $region37: #{tpu_custom_call.1} parent=1 // pred_fallthru
      _
    %1218 = vsyncpa [#allocation3], 1

</llo_original>
